<compile_context>
chip_gen: v7x
topology: tpu7x:2x2x1
jax: 0.10.0
libtpu: 0.0.40
codegen_flags: <defaults>
</compile_context>

<pallas_src>
import functools

import jax
import jax.numpy as jnp
from jax import lax
from jax.experimental import pallas as pl
from jax.experimental.pallas import tpu as pltpu

BN_EPS = 1e-5

# Column indices into the packed (C_OUT, 17) per-channel parameter tile.
(I_B1, I_ACT_S, I_ACT_B, I_C3_S, I_C3_B, I_B3,
 I_C33_S, I_C33_B, I_B33A, I_B33B,
 I_DW_B, I_DW_S, I_DW_SH, I_PW_B, I_PW_S, I_PW_SH, I_BF) = range(17)


# ----------------------------------------------------------------------------
# Tiny one-time probe that pins down pltpu.roll's rotation direction, so the
# spatial-shift helper is correct regardless of the convention.
# ----------------------------------------------------------------------------
@functools.lru_cache(maxsize=None)
def _roll_matches_jnp():
    def k(x_ref, o_ref):
        o_ref[...] = pltpu.roll(x_ref[...], 1, 1)

    with jax.ensure_compile_time_eval():
        x = jnp.broadcast_to(jnp.arange(128, dtype=jnp.float32), (8, 128))
        out = pl.pallas_call(
            k, out_shape=jax.ShapeDtypeStruct((8, 128), jnp.float32))(x)
        return bool(jnp.array_equal(out, jnp.roll(x, 1, axis=1)))


# ----------------------------------------------------------------------------
# Fused kernel: one image per grid step, all data kept as (C, H*W) in VMEM.
# ----------------------------------------------------------------------------
def _dual_path_kernel(
        x_ref, fc1t_ref, fc2_ref, cin_vec_ref, w1_ref, sa_w_ref,
        w3_ref, w33a_ref, w33b_ref, dw_w_ref, w_pw_ref, wf_ref, cvec_ref,
        o_ref, patches_ref, stack_ref, *, H, W, C_OUT, ROLL_FWD):
    f32 = jnp.float32
    HW = H * W

    def sigmoid(v):
        return 1.0 / (1.0 + jnp.exp(-v))

    # Row / column index of every flattened pixel (lane-dim iota, no reshape).
    idx = lax.broadcasted_iota(jnp.int32, (1, HW), 1)
    row = idx // W
    col = idx % W

    # Factored, cached boundary masks: mask(dh, dw) = row_ok(dh) * col_ok(dw).
    row_ok, col_ok, mask_cache = {}, {}, {}

    def _row_ok(dh):
        if dh not in row_ok:
            row_ok[dh] = ((row + dh >= 0) & (row + dh < H)).astype(f32)
        return row_ok[dh]

    def _col_ok(dw):
        if dw not in col_ok:
            col_ok[dw] = ((col + dw >= 0) & (col + dw < W)).astype(f32)
        return col_ok[dw]

    def tap_mask(dh, dw):
        if (dh, dw) not in mask_cache:
            if dh == 0:
                m = _col_ok(dw)
            elif dw == 0:
                m = _row_ok(dh)
            else:
                m = _row_ok(dh) * _col_ok(dw)
            mask_cache[(dh, dw)] = m
        return mask_cache[(dh, dw)]

    def shift2d(v, dh, dw):
        """out[:, h*W+w] = v[:, (h+dh)*W+(w+dw)], zero outside the image."""
        if dh == 0 and dw == 0:
            return v
        delta = dh * W + dw
        s = (-delta) % HW if ROLL_FWD else delta % HW
        return pltpu.roll(v, s, 1) * tap_mask(dh, dw)

    cvec = cvec_ref[...]                                   # (C_OUT, 17)

    def cv(i):                                             # (C_OUT, 1) column
        return cvec[:, i:i + 1]

    x = x_ref[0]                                           # (C_IN, HW)

    # ---- channel attention ---------------------------------------------------
    fc1t = fc1t_ref[...]                                   # (C_IN, HID)
    fc2w = fc2_ref[...]                                    # (C_IN, HID)

    def se_mlp(pooled):                                    # pooled: (C_IN, 1)
        h = jnp.sum(fc1t * pooled, axis=0, keepdims=True)  # (1, HID)
        h = jnp.maximum(h, 0.0)
        return jnp.sum(fc2w * h, axis=1, keepdims=True)    # (C_IN, 1)

    gate_c = sigmoid(se_mlp(jnp.mean(x, axis=1, keepdims=True)) +
                     se_mlp(jnp.max(x, axis=1, keepdims=True)))
    x_ca = x * gate_c

    # ---- conv1: BN(C_IN) -> ReLU -> 1x1 conv, then "action" (BN -> ReLU) ------
    cin_vec = cin_vec_ref[...]                             # (C_IN, 2)
    y = jnp.maximum(x_ca * cin_vec[:, 0:1] + cin_vec[:, 1:2], 0.0)
    x1 = jnp.dot(w1_ref[...], y, preferred_element_type=f32) + cv(I_B1)
    x1 = jnp.maximum(x1 * cv(I_ACT_S) + cv(I_ACT_B), 0.0)

    # ---- fused 7x7 tap loop: spatial attention + depthwise share rolls --------
    # Stack [x1 ; channel-avg ; channel-max] so each tap is one roll + one mask.
    stack_ref[0:C_OUT, :] = x1
    stack_ref[C_OUT:C_OUT + 1, :] = jnp.mean(x1, axis=0, keepdims=True)
    stack_ref[C_OUT + 1:C_OUT + 2, :] = jnp.max(x1, axis=0, keepdims=True)
    stack = stack_ref[...]                                 # (C_OUT + 2, HW)

    sa_w = sa_w_ref[...]                                   # (2, 49)
    dw_w = dw_w_ref[...]                                   # (C_OUT, 49)
    acc_dw = jnp.zeros((C_OUT, HW), f32)
    s_acc = jnp.zeros((2, HW), f32)
    for kh in range(7):
        for kw in range(7):
            t = kh * 7 + kw
            sh = shift2d(stack, kh - 3, kw - 3)
            acc_dw = acc_dw + dw_w[:, t:t + 1] * sh[0:C_OUT]
            s_acc = s_acc + sa_w[:, t:t + 1] * sh[C_OUT:C_OUT + 2]
    s_map = jnp.sum(s_acc, axis=0, keepdims=True)          # (1, HW)

    sa = x1 * sigmoid(s_map)
    att1 = x1 + sa

    # ---- 3x3 convs: im2col in VMEM scratch -> single MXU matmul ---------------
    def conv3x3(inp, w_flat):                              # inp (C_OUT, HW)
        for kh in range(3):
            for kw in range(3):
                t = kh * 3 + kw
                patches_ref[t * C_OUT:(t + 1) * C_OUT, :] = shift2d(
                    inp, kh - 1, kw - 1)
        # patches: (9*C_OUT, HW), fully overwritten on each call.
        return jnp.dot(w_flat, patches_ref[...], preferred_element_type=f32)

    a3 = jnp.maximum(att1 * cv(I_C3_S) + cv(I_C3_B), 0.0)
    conv3_1 = conv3x3(a3, w3_ref[...]) + cv(I_B3) + att1

    a33 = jnp.maximum(att1 * cv(I_C33_S) + cv(I_C33_B), 0.0)
    t33 = conv3x3(a33, w33a_ref[...]) + cv(I_B33A)
    conv3_2 = conv3x3(t33, w33b_ref[...]) + cv(I_B33B) + sa

    # ---- depthwise 7x7 -> ReLU -> BN, residual, pointwise 1x1 -> ReLU -> BN ---
    d = jnp.maximum(acc_dw + cv(I_DW_B), 0.0)
    d = d * cv(I_DW_S) + cv(I_DW_SH) + x1
    pw = jnp.maximum(
        jnp.dot(w_pw_ref[...], d, preferred_element_type=f32) + cv(I_PW_B), 0.0)
    dw_out = pw * cv(I_PW_S) + cv(I_PW_SH)

    # ---- concat + final 1x1 conv (three summed matmuls) + shared action -------
    wf = wf_ref[...]                                       # (C_OUT, 3*C_OUT)
    att2 = (jnp.dot(wf[:, 0:C_OUT], conv3_1, preferred_element_type=f32)
            + jnp.dot(wf[:, C_OUT:2 * C_OUT], conv3_2, preferred_element_type=f32)
            + jnp.dot(wf[:, 2 * C_OUT:3 * C_OUT], dw_out, preferred_element_type=f32)
            + cv(I_BF))
    att2 = jnp.maximum(att2 * cv(I_ACT_S) + cv(I_ACT_B), 0.0)

    o_ref[0] = att2


# ----------------------------------------------------------------------------
# Wrapper: pack parameters, build BlockSpecs, launch the fused kernel.
# ----------------------------------------------------------------------------
def _scale_shift(bn):
    s = bn["g"] / jnp.sqrt(bn["v"] + BN_EPS)
    return s, bn["b"] - bn["m"] * s


def dual_path_block_pallas(x_nchw, p):
    """Fused forward pass of DualPathChannelBlock (inference-mode BatchNorm)."""
    # TODO(synk): training-mode BatchNorm (batch statistics + running-stat
    # updates) is not implemented; running stats are folded into scale/shift.
    f32 = jnp.float32
    N, C_IN, H, W = x_nchw.shape
    C_OUT = p["w1"].shape[0]
    HW = H * W

    x = x_nchw.reshape(N, C_IN, HW).astype(f32)    # NCHW -> (N, C, H*W), no transpose

    in_s, in_sh = _scale_shift(p["bn_in"])
    act_s, act_sh = _scale_shift(p["bn_act"])
    c3_s, c3_sh = _scale_shift(p["bn_c3"])
    c33_s, c33_sh = _scale_shift(p["bn_c33"])
    dw_s, dw_sh = _scale_shift(p["bn_dw"])
    pw_s, pw_sh = _scale_shift(p["bn_pw"])

    cin_vec = jnp.stack([in_s, in_sh], axis=1)                        # (C_IN, 2)
    cvec = jnp.stack([p["b1"], act_s, act_sh, c3_s, c3_sh, p["b3"],
                      c33_s, c33_sh, p["b33a"], p["b33b"],
                      p["dw_b"], dw_s, dw_sh, p["b_pw"], pw_s, pw_sh,
                      p["bf"]], axis=1)                               # (C_OUT, 17)

    def flat3(w):  # (O, I, 3, 3) -> (O, 9*I), tap-major to match im2col order
        o, i, kh, kw = w.shape
        return jnp.transpose(w, (0, 2, 3, 1)).reshape(o, kh * kw * i)

    fc1t = jnp.transpose(p["fc1_w"][:, :, 0, 0])                      # (C_IN, HID)
    fc2w = p["fc2_w"][:, :, 0, 0]                                     # (C_IN, HID)
    w1 = p["w1"][:, :, 0, 0]                                          # (C_OUT, C_IN)
    sa_w = p["sa_w"][0].reshape(2, 49)
    w3, w33a, w33b = flat3(p["w3"]), flat3(p["w33a"]), flat3(p["w33b"])
    dw_w = p["dw_w"].reshape(C_OUT, 49)
    w_pw = p["w_pw"][:, :, 0, 0]
    wf = p["wf"][:, :, 0, 0]                                          # (C_OUT, 3*C_OUT)

    weights = [fc1t, fc2w, cin_vec, w1, sa_w, w3, w33a, w33b, dw_w, w_pw, wf, cvec]
    weights = [w.astype(f32) for w in weights]

    def full_spec(a):
        nd = a.ndim
        return pl.BlockSpec(a.shape, lambda n, _nd=nd: (0,) * _nd)

    kernel = functools.partial(
        _dual_path_kernel, H=H, W=W, C_OUT=C_OUT, ROLL_FWD=_roll_matches_jnp())

    out = pl.pallas_call(
        kernel,
        out_shape=jax.ShapeDtypeStruct((N, C_OUT, HW), f32),
        grid=(N,),
        in_specs=[pl.BlockSpec((1, C_IN, HW), lambda n: (n, 0, 0))]
                 + [full_spec(a) for a in weights],
        out_specs=pl.BlockSpec((1, C_OUT, HW), lambda n: (n, 0, 0)),
        scratch_shapes=[pltpu.VMEM((9 * C_OUT, HW), f32),             # im2col patches
                        pltpu.VMEM((C_OUT + 2, HW), f32)],            # [x1; avg; max]
        compiler_params=pltpu.CompilerParams(
            dimension_semantics=("parallel",)),
    )(x, *weights)

    return out.reshape(N, C_OUT, H, W)


# ----------------------------------------------------------------------------
# Deterministic synthetic parameters (PyTorch conv/BN layouts).
# ----------------------------------------------------------------------------
def _conv_w(key, cout, cin, k):
    fan_in = cin * k * k
    return jax.random.normal(key, (cout, cin, k, k), jnp.float32) / (fan_in ** 0.5)


def _bias(key, c):
    return 0.05 * jax.random.normal(key, (c,), jnp.float32)


def _bn_raw(key, c):
    kg, kb, km, kv = jax.random.split(key, 4)
    return dict(
        g=1.0 + 0.1 * jax.random.normal(kg, (c,), jnp.float32),
        b=0.1 * jax.random.normal(kb, (c,), jnp.float32),
        m=0.1 * jax.random.normal(km, (c,), jnp.float32),
        v=1.0 + 0.1 * jnp.abs(jax.random.normal(kv, (c,), jnp.float32)),
    )


def make_params(key, c_in, c_out):
    assert c_in >= 16, "channel_attention uses in_planes // 16 hidden units"
    hid = c_in // 16
    ks = jax.random.split(key, 23)
    p = {}
    p["fc1_w"] = _conv_w(ks[0], hid, c_in, 1)      # channel attention fc1 (no bias)
    p["fc2_w"] = _conv_w(ks[1], c_in, hid, 1)      # channel attention fc2 (no bias)
    p["bn_in"] = _bn_raw(ks[2], c_in)
    p["w1"], p["b1"] = _conv_w(ks[3], c_out, c_in, 1), _bias(ks[4], c_out)
    p["bn_act"] = _bn_raw(ks[5], c_out)            # shared "action" BN
    p["sa_w"] = _conv_w(ks[6], 1, 2, 7)            # spatial attention conv (no bias)
    p["bn_c3"] = _bn_raw(ks[7], c_out)
    p["w3"], p["b3"] = _conv_w(ks[8], c_out, c_out, 3), _bias(ks[9], c_out)
    p["bn_c33"] = _bn_raw(ks[10], c_out)
    p["w33a"], p["b33a"] = _conv_w(ks[11], c_out, c_out, 3), _bias(ks[12], c_out)
    p["w33b"], p["b33b"] = _conv_w(ks[13], c_out, c_out, 3), _bias(ks[14], c_out)
    p["dw_w"], p["dw_b"] = _conv_w(ks[15], c_out, 1, 7), _bias(ks[16], c_out)
    p["bn_dw"] = _bn_raw(ks[17], c_out)
    p["w_pw"], p["b_pw"] = _conv_w(ks[18], c_out, c_out, 1), _bias(ks[19], c_out)
    p["bn_pw"] = _bn_raw(ks[20], c_out)
    p["wf"], p["bf"] = _conv_w(ks[21], c_out, 3 * c_out, 1), _bias(ks[22], c_out)
    return p


# ----------------------------------------------------------------------------
# Pure-JAX reference (XLA convs, NCHW) for verification.
# ----------------------------------------------------------------------------
def _bn_nchw(x, bn):
    s, sh = _scale_shift(bn)
    return x * s[None, :, None, None] + sh[None, :, None, None]


def _conv_nchw(x, w, b=None, pad=0, groups=1):
    y = lax.conv_general_dilated(
        x, w, window_strides=(1, 1), padding=[(pad, pad), (pad, pad)],
        dimension_numbers=("NCHW", "OIHW", "NCHW"), feature_group_count=groups)
    if b is not None:
        y = y + b[None, :, None, None]
    return y


def dual_path_block_reference(x, p):
    def se(pool):
        return _conv_nchw(jnp.maximum(_conv_nchw(pool, p["fc1_w"]), 0.0), p["fc2_w"])

    avg = jnp.mean(x, axis=(2, 3), keepdims=True)
    mx = jnp.max(x, axis=(2, 3), keepdims=True)
    x_ca = x * jax.nn.sigmoid(se(avg) + se(mx))
    x1 = _conv_nchw(jnp.maximum(_bn_nchw(x_ca, p["bn_in"]), 0.0), p["w1"], p["b1"])
    x1 = jnp.maximum(_bn_nchw(x1, p["bn_act"]), 0.0)
    m = jnp.concatenate([jnp.mean(x1, axis=1, keepdims=True),
                         jnp.max(x1, axis=1, keepdims=True)], axis=1)
    sa = x1 * jax.nn.sigmoid(_conv_nchw(m, p["sa_w"], pad=3))
    att1 = x1 + sa
    c3 = _conv_nchw(jnp.maximum(_bn_nchw(att1, p["bn_c3"]), 0.0),
                    p["w3"], p["b3"], pad=1)
    conv3_1 = c3 + att1
    t = _conv_nchw(jnp.maximum(_bn_nchw(att1, p["bn_c33"]), 0.0),
                   p["w33a"], p["b33a"], pad=1)
    conv3_2 = _conv_nchw(t, p["w33b"], p["b33b"], pad=1) + sa
    d = _conv_nchw(x1, p["dw_w"], p["dw_b"], pad=3, groups=x1.shape[1])
    d = _bn_nchw(jnp.maximum(d, 0.0), p["bn_dw"]) + x1
    d = _bn_nchw(jnp.maximum(_conv_nchw(d, p["w_pw"], p["b_pw"]), 0.0), p["bn_pw"])
    cat = jnp.concatenate([conv3_1, conv3_2, d], axis=1)
    att2 = _conv_nchw(cat, p["wf"], p["bf"])
    return jnp.maximum(_bn_nchw(att2, p["bn_act"]), 0.0)


if __name__ == "__main__":
    # channel_attention uses in_planes // 16, so in_channels must be >= 16.
    N, C_IN, C_OUT, H, W = 2, 16, 8, 16, 16
    key = jax.random.PRNGKey(0)
    kx, kp = jax.random.split(key)

    x = jax.random.normal(kx, (N, C_IN, H, W), jnp.float32)   # NCHW, like PyTorch
    params = make_params(kp, C_IN, C_OUT)

    out = jax.block_until_ready(dual_path_block_pallas(x, params))
    ref = jax.block_until_ready(dual_path_block_reference(x, params))

    assert out.shape == (N, C_OUT, H, W), out.shape
    err = float(jnp.max(jnp.abs(out - ref)))
    assert jnp.allclose(out, ref, atol=1e-4, rtol=1e-4), f"mismatch vs reference: {err}"

    print("KERNEL_OK")
</pallas_src>

<mosaic_0001>
module attributes {stable_mosaic.version = 11 : i64} {
  func.func @k(%arg0: memref<8x128xf32, #tpu.memory_space<vmem>>, %arg1: memref<8x128xf32, #tpu.memory_space<vmem>>) attributes {dimension_semantics = [], scalar_prefetch = 0 : i64, scratch_operands = 0 : i64, tpu.core_type = #tpu.core_type<tc>} {
    %c0 = arith.constant 0 : index
    %c0_0 = arith.constant 0 : index
    %0 = vector.load %arg0[%c0, %c0_0] : memref<8x128xf32, #tpu.memory_space<vmem>>, vector<8x128xf32>
    %c1_i32 = arith.constant 1 : i32
    %1 = tpu.dynamic_rotate %0 by %c1_i32 dim 1 : vector<8x128xf32>, i32 -> vector<8x128xf32>
    %c0_1 = arith.constant 0 : index
    %c0_2 = arith.constant 0 : index
    %2 = vector.load %arg1[%c0_1, %c0_2] : memref<8x128xf32, #tpu.memory_space<vmem>>, vector<8x128xf32>
    tpu.vector_store %arg1[%c0_1, %c0_2], %1 {strides = array<i32>} : memref<8x128xf32, #tpu.memory_space<vmem>>, vector<8x128xf32>,
    return
  }
}

</mosaic_0001>

<llo_original>
// kernel: tpu_custom_call.1
$region0: #{tpu_custom_call.1}
  #allocation0 [shape = 'u32[]', space=smem, size = 0x4, offset = 0x4, fixed_abs, tag = 'smem constant byte address 0x4 - core index']
  #allocation1 [shape = 'u32[144,128]{1,0:T(1,128)}', space=vmem, size = 0x12000, scoped, tag = 'internal scratch']
  %s0 = inlined_call_operand.hbm [shape: f32[8,128], index: 0, kind: input, shape index: {}]
  %s1 = inlined_call_operand.hbm [shape: f32[8,128], index: 1, kind: output, shape index: {}]
  %s2 = sld [smem:[#allocation0]]
  $region18: #{tpu_custom_call.1} parent=0
    _
  %s4 = ssub.s32 1, %s2
  %s5 = scalar_select 0, %s4, %s2
  $region1: #{tpu_custom_call.1} parent=0
    #allocation2 [shape = 'u8[4096]{0}', space=vmem, size = 0x1000, scoped, tag = 'input window, operand 0, single buffered']
    #allocation3 [shape = 's32[1]{0}', space=sflag, size = 0x4, scoped, tag = 'scoped memory for tpu_custom_call.1']
    #allocation4 [shape = 's32[1]{0}', space=sflag, size = 0x4, scoped, tag = 'scoped memory for tpu_custom_call.1']
    #allocation5 [shape = 'u8[4096]{0}', space=vmem, size = 0x1000, scoped, tag = 'output window, operand 0, single buffered']
    %6 = vsyncpa [#allocation3], 0
    %7 = vsyncpa [#allocation4], 0
    // Predicated region
    $region2: #{tpu_custom_call.1} parent=1 // pred_check
      _
    $region3: #{tpu_custom_call.1} parent=1 // pred_check_branch
      %9 = sbr.rel (0) target = $region5
    $region4: #{tpu_custom_call.1} parent=1 // pred_region
      %s11 = ssub.s32 128, 128
      %12 = vsyncadd [#allocation3], %s11
      %s14 = sshll.u32 [#allocation2], 4
      %s15 = int_to_ptr.vmem [resolvable:$true] %s14
      %17 = dma.hbm_to_vmem [thread:$0]  %s0, 128, %s15, [#allocation3]
    $region5: #{tpu_custom_call.1} parent=1 // pred_fallthru
      _
    // Predicated region
    $region6: #{tpu_custom_call.1} parent=1 // pred_check
      _
    $region7: #{tpu_custom_call.1} parent=1 // pred_check_branch
      %19 = sbr.rel (0) target = $region9
    $region8: #{tpu_custom_call.1} parent=1 // pred_region
      %20 = dma.done [#allocation3], 128
    $region9: #{tpu_custom_call.1} parent=1 // pred_fallthru
      _
    %v21 = vld [vmem:[#allocation2] sm:$0xff]
    %22 = vrot.lane.b32.xlu0 %v21, 1
    %v23 = vpop.permute.xlu0 %22
    %24 = vst [vmem:[#allocation5] sm:$0xff] %v23
    // Predicated region
    $region10: #{tpu_custom_call.1} parent=1 // pred_check
      _
    $region11: #{tpu_custom_call.1} parent=1 // pred_check_branch
      %26 = sbr.rel (0) target = $region13
    $region12: #{tpu_custom_call.1} parent=1 // pred_region
      %s28 = ssub.s32 128, 128
      %29 = vsyncadd [#allocation4], %s28
      %s31 = sshll.u32 [#allocation5], 4
      %s32 = int_to_ptr.vmem [resolvable:$true] %s31
      %34 = dma.vmem_to_hbm [thread:$0]  %s32, 128, %s1, [#allocation4]
    $region13: #{tpu_custom_call.1} parent=1 // pred_fallthru
      _
    // Predicated region
    $region14: #{tpu_custom_call.1} parent=1 // pred_check
      _
    $region15: #{tpu_custom_call.1} parent=1 // pred_check_branch
      %36 = sbr.rel (0) target = $region17
    $region16: #{tpu_custom_call.1} parent=1 // pred_region
      %37 = dma.done [#allocation4], 128
    $region17: #{tpu_custom_call.1} parent=1 // pred_fallthru
      _
    %38 = vsyncpa [#allocation3], 1
    %39 = vsyncpa [#allocation4], 1

</llo_original>
